<compile_context>
chip_gen: v5e
topology: v5e:2x2
jax: 0.10.0
libtpu: 0.0.40
codegen_flags: <defaults>
</compile_context>

<pallas_src>
import functools

import jax
import jax.numpy as jnp
from jax import lax
from jax.experimental import pallas as pl
from jax.experimental.pallas import tpu as pltpu


def _mha_kernel(x_ref, wq_ref, wkv_ref, wo_ref, *rest,
                num_heads, tq, has_add):
    """Grid = (batch, query_tile). Full attention for one query tile."""
    if has_add:
        add_ref, o_ref, w_ref, kv_ref, ctx_ref = rest
    else:
        add_ref = None
        o_ref, w_ref, kv_ref, ctx_ref = rest

    S, D = x_ref.shape
    dh = D // num_heads
    scale = 1.0 / jnp.sqrt(jnp.float32(dh))
    t = pl.program_id(1)

    # K/V projections: one wide fused matmul, computed once per batch element
    # (t == 0).  The VMEM scratch persists across the sequential query-tile
    # axis, so later tiles reuse it without recompute or re-DMA.
    @pl.when(t == 0)
    def _():
        kv = jnp.dot(x_ref[...], wkv_ref[...],
                     preferred_element_type=jnp.float32)          # (S, 2D)
        kv_ref[0] = kv[:, :D].astype(kv_ref.dtype)                # K
        kv_ref[1] = kv[:, D:].astype(kv_ref.dtype)                # V

    # Q projection on this query tile only; fold the softmax scale into Q.
    q_start = pl.multiple_of(t * tq, tq)
    xq = x_ref[pl.ds(q_start, tq), :]                             # (TQ, D)
    q = jnp.dot(xq, wq_ref[...], preferred_element_type=jnp.float32)
    q = (q * scale).astype(x_ref.dtype)

    k = kv_ref[0]                                                 # (S, D)
    v = kv_ref[1]                                                 # (S, D)

    w_acc = jnp.zeros((tq, S), jnp.float32)                       # head-averaged probs
    for h in range(num_heads):                                    # static unrolled
        lo = h * dh
        qh = q[:, lo:lo + dh]                                     # (TQ, dh)
        kh = k[:, lo:lo + dh]                                     # (S, dh)
        vh = v[:, lo:lo + dh]                                     # (S, dh)
        # Contract the last dims -> no explicit kh.T (MXU transposed-operand
        # path instead of an XLU transpose + copy).
        s = lax.dot_general(qh, kh, (((1,), (1,)), ((), ())),
                            preferred_element_type=jnp.float32)   # (TQ, S)
        m = jnp.max(s, axis=-1, keepdims=True)
        e = jnp.exp(s - m)
        p = e * pl.reciprocal(jnp.sum(e, axis=-1, keepdims=True), approx=True)
        w_acc = w_acc + p
        # Write this head's context straight into its column range of the
        # context slab; only one (TQ, S) prob tile is ever live.
        ctx_ref[:, lo:lo + dh] = jnp.dot(
            p.astype(v.dtype), vh,
            preferred_element_type=jnp.float32).astype(ctx_ref.dtype)

    out = jnp.dot(ctx_ref[...], wo_ref[...], preferred_element_type=jnp.float32)
    if has_add:
        out = out + add_ref[...].astype(jnp.float32)              # fused wrapper add
    o_ref[...] = out.astype(o_ref.dtype)
    w_ref[...] = (w_acc * (1.0 / num_heads)).astype(w_ref.dtype)


def _choose_tq(S):
    """Largest 128-multiple query tile that divides S (bounds VMEM residency)."""
    for tq in (512, 256, 128):
        if S % tq == 0:
            return tq
    return S


def mha_attention(x, wq, wkv, wo, add=None, *, num_heads):
    """Pallas multi-head self-attention. Returns (output, head-averaged weights)."""
    B, S, D = x.shape
    tq = _choose_tq(S)
    T = S // tq
    has_add = add is not None

    kernel = functools.partial(_mha_kernel, num_heads=num_heads, tq=tq,
                               has_add=has_add)

    in_specs = [
        # Full-sequence activations (batch dim squeezed); block index only
        # depends on b, so Pallas re-DMAs it only when the batch changes.
        pl.BlockSpec((None, S, D), lambda b, t: (b, 0, 0)),
        pl.BlockSpec((D, D), lambda b, t: (0, 0)),        # Wq   (constant index -> no re-DMA)
        pl.BlockSpec((D, 2 * D), lambda b, t: (0, 0)),    # Wkv  (fused K|V)
        pl.BlockSpec((D, D), lambda b, t: (0, 0)),        # Wo
    ]
    args = [x, wq, wkv, wo]
    if has_add:
        in_specs.append(pl.BlockSpec((None, tq, D), lambda b, t: (b, t, 0)))
        args.append(add)

    out, weights = pl.pallas_call(
        kernel,
        out_shape=(
            jax.ShapeDtypeStruct((B, S, D), x.dtype),
            jax.ShapeDtypeStruct((B, S, S), jnp.float32),  # head-averaged attention
        ),
        grid_spec=pltpu.PrefetchScalarGridSpec(
            num_scalar_prefetch=0,
            grid=(B, T),
            in_specs=in_specs,
            out_specs=[
                pl.BlockSpec((None, tq, D), lambda b, t: (b, t, 0)),
                pl.BlockSpec((None, tq, S), lambda b, t: (b, t, 0)),
            ],
            scratch_shapes=[
                pltpu.VMEM((2, S, D), x.dtype),   # persistent K / V projections
                pltpu.VMEM((tq, D), x.dtype),     # per-tile context slab
            ],
        ),
        compiler_params=pltpu.CompilerParams(
            # batch axis parallel (megacore); query-tile axis is sequential
            # because the K/V scratch is computed at t == 0 and reused.
            dimension_semantics=("parallel", "arbitrary")),
    )(*args)
    return out, weights


class PallasSelfAttention:
    """The `attn` module wrapped by AttnWrapper (simple no-bias MHA)."""

    def __init__(self, hidden_dim, num_heads, key):
        assert hidden_dim % num_heads == 0
        self.num_heads = num_heads
        k1, k2, k3, k4 = jax.random.split(key, 4)
        s = 1.0 / jnp.sqrt(jnp.float32(hidden_dim))
        self.wq = jax.random.normal(k1, (hidden_dim, hidden_dim), jnp.float32) * s
        self.wk = jax.random.normal(k2, (hidden_dim, hidden_dim), jnp.float32) * s
        self.wv = jax.random.normal(k3, (hidden_dim, hidden_dim), jnp.float32) * s
        self.wo = jax.random.normal(k4, (hidden_dim, hidden_dim), jnp.float32) * s
        # Pre-fuse K|V weights into one (D, 2D) matrix for a single wide matmul.
        self.wkv = jnp.concatenate([self.wk, self.wv], axis=1)

    def __call__(self, x, add=None):
        out, attn_weights = mha_attention(
            x, self.wq, self.wkv, self.wo, add, num_heads=self.num_heads)
        return (out, attn_weights)


class AttnWrapper:
    """JAX/Pallas port of the PyTorch AttnWrapper."""

    def __init__(self, attn, save_all=False):
        self.attn = attn
        self.activations = None
        self.add_tensor = None
        self.save_all = save_all

    def __call__(self, *args, **kwargs):
        # The add_tensor addition is fused into the attention kernel
        # (mathematically identical to adding after the attn call).  When
        # add_tensor is None, a kernel variant without the add stream is used
        # (no zero tensor is ever DMA'd).
        output = self.attn(*args, add=self.add_tensor, **kwargs)
        if self.save_all:
            self.activations = output[0]
        return output

    def reset(self):
        self.activations = None
        self.add_tensor = None


def _reference(x, wq, wk, wv, wo, add, num_heads):
    B, S, D = x.shape
    dh = D // num_heads
    q = (x @ wq).reshape(B, S, num_heads, dh)
    k = (x @ wk).reshape(B, S, num_heads, dh)
    v = (x @ wv).reshape(B, S, num_heads, dh)
    scores = jnp.einsum("bqhd,bkhd->bhqk", q, k) / jnp.sqrt(jnp.float32(dh))
    p = jax.nn.softmax(scores, axis=-1)
    ctx = jnp.einsum("bhqk,bkhd->bqhd", p, v).reshape(B, S, D)
    out = ctx @ wo
    if add is not None:
        out = out + add
    return out, p.mean(axis=1)   # head-averaged weights


if __name__ == "__main__":
    B, S, D, H = 2, 8, 32, 4

    key = jax.random.PRNGKey(0)
    k_x, k_add, k_w = jax.random.split(key, 3)
    x = jax.random.normal(k_x, (B, S, D), jnp.float32)
    add_tensor = jax.random.normal(k_add, (B, S, D), jnp.float32)

    attn = PallasSelfAttention(D, H, k_w)

    # Path 1: add_tensor set, activations cached (save_all=True).
    wrapper = AttnWrapper(attn, save_all=True)
    wrapper.add_tensor = add_tensor
    output = wrapper(x)
    out = jax.block_until_ready(output[0])
    attn_weights = jax.block_until_ready(output[1])

    ref_out, ref_w = _reference(x, attn.wq, attn.wk, attn.wv, attn.wo,
                                add_tensor, H)
    assert out.shape == (B, S, D)
    assert attn_weights.shape == (B, S, S)
    assert wrapper.activations is not None
    assert jnp.allclose(out, ref_out, atol=3e-2, rtol=3e-2)
    assert jnp.allclose(attn_weights, ref_w, atol=5e-3, rtol=1e-2)

    # Path 2: add_tensor is None -> kernel variant with no add input stream.
    wrapper.reset()
    out2 = jax.block_until_ready(wrapper(x)[0])
    ref_out2, _ = _reference(x, attn.wq, attn.wk, attn.wv, attn.wo, None, H)
    assert jnp.allclose(out2, ref_out2, atol=3e-2, rtol=3e-2)

    print("KERNEL_OK")
</pallas_src>

<mosaic_0001>
module attributes {stable_mosaic.version = 11 : i64} {
  func.func @_mha_kernel(%arg0: i32, %arg1: i32, %arg2: memref<1x8x32xf32, #tpu.memory_space<vmem>>, %arg3: memref<32x32xf32, #tpu.memory_space<vmem>>, %arg4: memref<32x64xf32, #tpu.memory_space<vmem>>, %arg5: memref<32x32xf32, #tpu.memory_space<vmem>>, %arg6: memref<1x8x32xf32, #tpu.memory_space<vmem>>, %arg7: memref<1x8x32xf32, #tpu.memory_space<vmem>>, %arg8: memref<1x8x8xf32, #tpu.memory_space<vmem>>, %arg9: memref<2x8x32xf32, #tpu.memory_space<vmem>>, %arg10: memref<8x32xf32, #tpu.memory_space<vmem>>) attributes {dimension_semantics = [#tpu.dimension_semantics<parallel>, #tpu.dimension_semantics<arbitrary>], iteration_bounds = array<i64: 2, 1>, scalar_prefetch = 0 : i64, scratch_operands = 2 : i64, tpu.core_type = #tpu.core_type<tc>, window_params = [{transform_indices = @transform_0, window_bounds = array<i64: 1, 8, 32>}, {pipeline_mode = #tpu.pipeline_mode<synchronous>, transform_indices = @transform_1, window_bounds = array<i64: 32, 32>}, {pipeline_mode = #tpu.pipeline_mode<synchronous>, transform_indices = @transform_2, window_bounds = array<i64: 32, 64>}, {pipeline_mode = #tpu.pipeline_mode<synchronous>, transform_indices = @transform_3, window_bounds = array<i64: 32, 32>}, {transform_indices = @transform_4, window_bounds = array<i64: 1, 8, 32>}, {transform_indices = @transform_5, window_bounds = array<i64: 1, 8, 32>}, {transform_indices = @transform_6, window_bounds = array<i64: 1, 8, 8>}]} {
    %cst = arith.constant 8.000000e+00 : f32
    %0 = math.sqrt %cst : f32
    %cst_0 = arith.constant 1.000000e+00 : f32
    %1 = arith.divf %cst_0, %0 : f32
    %c0_i32 = arith.constant 0 : i32
    %2 = arith.cmpi eq, %arg1, %c0_i32 : i32
    %3 = arith.extui %2 : i1 to i32
    %c0_i32_1 = arith.constant 0 : i32
    %4 = arith.cmpi ne, %3, %c0_i32_1 : i32
    scf.if %4 {
      %c0_48 = arith.constant 0 : index
      %c0_49 = arith.constant 0 : index
      %c0_50 = arith.constant 0 : index
      %101 = vector.load %arg2[%c0_48, %c0_49, %c0_50] : memref<1x8x32xf32, #tpu.memory_space<vmem>>, vector<1x8x32xf32>
      %102 = vector.shape_cast %101 : vector<1x8x32xf32> to vector<8x32xf32>
      %c0_51 = arith.constant 0 : index
      %c0_52 = arith.constant 0 : index
      %103 = vector.load %arg4[%c0_51, %c0_52] : memref<32x64xf32, #tpu.memory_space<vmem>>, vector<32x64xf32>
      %cst_53 = arith.constant dense<0.000000e+00> : vector<8x64xf32>
      %104 = tpu.matmul %102, %103, %cst_53 {dimension_numbers = #tpu.dot_dimension_numbers<[1], [0], [0], [1], [0, 0, 1, 1], [], []>} : vector<8x32xf32>, vector<32x64xf32>, vector<8x64xf32> -> vector<8x64xf32>
      %105 = vector.extract_strided_slice %104 {offsets = [0, 0], sizes = [8, 32], strides = [1, 1]} : vector<8x64xf32> to vector<8x32xf32>
      %c0_54 = arith.constant 0 : index
      %c0_55 = arith.constant 0 : index
      %c0_56 = arith.constant 0 : index
      %106 = vector.load %arg9[%c0_54, %c0_55, %c0_56] : memref<2x8x32xf32, #tpu.memory_space<vmem>>, vector<1x8x32xf32>
      %107 = vector.shape_cast %106 : vector<1x8x32xf32> to vector<8x32xf32>
      %108 = vector.shape_cast %105 : vector<8x32xf32> to vector<1x8x32xf32>
      tpu.vector_store %arg9[%c0_54, %c0_55, %c0_56], %108 {strides = array<i32>} : memref<2x8x32xf32, #tpu.memory_space<vmem>>, vector<1x8x32xf32>,
      %109 = vector.extract_strided_slice %104 {offsets = [0, 32], sizes = [8, 32], strides = [1, 1]} : vector<8x64xf32> to vector<8x32xf32>
      %c1_57 = arith.constant 1 : index
      %c0_58 = arith.constant 0 : index
      %c0_59 = arith.constant 0 : index
      %110 = vector.load %arg9[%c1_57, %c0_58, %c0_59] : memref<2x8x32xf32, #tpu.memory_space<vmem>>, vector<1x8x32xf32>
      %111 = vector.shape_cast %110 : vector<1x8x32xf32> to vector<8x32xf32>
      %112 = vector.shape_cast %109 : vector<8x32xf32> to vector<1x8x32xf32>
      tpu.vector_store %arg9[%c1_57, %c0_58, %c0_59], %112 {strides = array<i32>} : memref<2x8x32xf32, #tpu.memory_space<vmem>>, vector<1x8x32xf32>,
    } else {
    }
    %c8_i32 = arith.constant 8 : i32
    %5 = arith.muli %arg1, %c8_i32 : i32
    %6 = tpu.assume_multiple %5, 8 : i32
    %c0 = arith.constant 0 : index
    %7 = arith.index_cast %6 : i32 to index
    %c0_2 = arith.constant 0 : index
    %8 = vector.load %arg2[%c0, %7, %c0_2] : memref<1x8x32xf32, #tpu.memory_space<vmem>>, vector<1x8x32xf32>
    %9 = vector.shape_cast %8 : vector<1x8x32xf32> to vector<8x32xf32>
    %c0_3 = arith.constant 0 : index
    %c0_4 = arith.constant 0 : index
    %10 = vector.load %arg3[%c0_3, %c0_4] : memref<32x32xf32, #tpu.memory_space<vmem>>, vector<32x32xf32>
    %cst_5 = arith.constant dense<0.000000e+00> : vector<8x32xf32>
    %11 = tpu.matmul %9, %10, %cst_5 {dimension_numbers = #tpu.dot_dimension_numbers<[1], [0], [0], [1], [0, 0, 1, 1], [], []>} : vector<8x32xf32>, vector<32x32xf32>, vector<8x32xf32> -> vector<8x32xf32>
    %12 = vector.broadcast %1 : f32 to vector<8x32xf32>
    %13 = arith.mulf %11, %12 : vector<8x32xf32>
    %c0_6 = arith.constant 0 : index
    %c0_7 = arith.constant 0 : index
    %c0_8 = arith.constant 0 : index
    %14 = vector.load %arg9[%c0_6, %c0_7, %c0_8] : memref<2x8x32xf32, #tpu.memory_space<vmem>>, vector<1x8x32xf32>
    %15 = vector.shape_cast %14 : vector<1x8x32xf32> to vector<8x32xf32>
    %c1 = arith.constant 1 : index
    %c0_9 = arith.constant 0 : index
    %c0_10 = arith.constant 0 : index
    %16 = vector.load %arg9[%c1, %c0_9, %c0_10] : memref<2x8x32xf32, #tpu.memory_space<vmem>>, vector<1x8x32xf32>
    %17 = vector.shape_cast %16 : vector<1x8x32xf32> to vector<8x32xf32>
    %cst_11 = arith.constant 0.000000e+00 : f32
    %18 = vector.broadcast %cst_11 : f32 to vector<8x8xf32>
    %19 = vector.extract_strided_slice %13 {offsets = [0, 0], sizes = [8, 8], strides = [1, 1]} : vector<8x32xf32> to vector<8x8xf32>
    %20 = vector.extract_strided_slice %15 {offsets = [0, 0], sizes = [8, 8], strides = [1, 1]} : vector<8x32xf32> to vector<8x8xf32>
    %21 = vector.extract_strided_slice %17 {offsets = [0, 0], sizes = [8, 8], strides = [1, 1]} : vector<8x32xf32> to vector<8x8xf32>
    %cst_12 = arith.constant dense<0.000000e+00> : vector<8x8xf32>
    %22 = tpu.matmul %19, %20, %cst_12 {dimension_numbers = #tpu.dot_dimension_numbers<[1], [1], [0], [0], [0, 0, 1, 0], [], []>} : vector<8x8xf32>, vector<8x8xf32>, vector<8x8xf32> -> vector<8x8xf32>
    %cst_13 = arith.constant dense<0xFF800000> : vector<8xf32>
    %23 = vector.multi_reduction <maximumf>, %22, %cst_13 [1] : vector<8x8xf32> to vector<8xf32>
    %24 = vector.shape_cast %23 : vector<8xf32> to vector<8x1xf32>
    %25 = vector.broadcast %24 : vector<8x1xf32> to vector<8x8xf32>
    %26 = arith.subf %22, %25 : vector<8x8xf32>
    %27 = math.exp %26 : vector<8x8xf32>
    %cst_14 = arith.constant dense<0.000000e+00> : vector<8xf32>
    %28 = vector.multi_reduction <add>, %27, %cst_14 [1] : vector<8x8xf32> to vector<8xf32>
    %29 = vector.shape_cast %28 : vector<8xf32> to vector<8x1xf32>
    %30 = tpu.reciprocal %29 {approx = true} : vector<8x1xf32> -> vector<8x1xf32>
    %31 = vector.broadcast %30 : vector<8x1xf32> to vector<8x8xf32>
    %32 = arith.mulf %27, %31 : vector<8x8xf32>
    %33 = arith.addf %18, %32 : vector<8x8xf32>
    %cst_15 = arith.constant dense<0.000000e+00> : vector<8x8xf32>
    %34 = tpu.matmul %32, %21, %cst_15 {dimension_numbers = #tpu.dot_dimension_numbers<[1], [0], [0], [1], [0, 0, 1, 1], [], []>} : vector<8x8xf32>, vector<8x8xf32>, vector<8x8xf32> -> vector<8x8xf32>
    %c0_16 = arith.constant 0 : index
    %c0_17 = arith.constant 0 : index
    %35 = vector.load %arg10[%c0_16, %c0_17] : memref<8x32xf32, #tpu.memory_space<vmem>>, vector<8x8xf32>
    tpu.vector_store %arg10[%c0_16, %c0_17], %34 {strides = array<i32>} : memref<8x32xf32, #tpu.memory_space<vmem>>, vector<8x8xf32>,
    %36 = vector.extract_strided_slice %13 {offsets = [0, 8], sizes = [8, 8], strides = [1, 1]} : vector<8x32xf32> to vector<8x8xf32>
    %37 = vector.extract_strided_slice %15 {offsets = [0, 8], sizes = [8, 8], strides = [1, 1]} : vector<8x32xf32> to vector<8x8xf32>
    %38 = vector.extract_strided_slice %17 {offsets = [0, 8], sizes = [8, 8], strides = [1, 1]} : vector<8x32xf32> to vector<8x8xf32>
    %cst_18 = arith.constant dense<0.000000e+00> : vector<8x8xf32>
    %39 = tpu.matmul %36, %37, %cst_18 {dimension_numbers = #tpu.dot_dimension_numbers<[1], [1], [0], [0], [0, 0, 1, 0], [], []>} : vector<8x8xf32>, vector<8x8xf32>, vector<8x8xf32> -> vector<8x8xf32>
    %cst_19 = arith.constant dense<0xFF800000> : vector<8xf32>
    %40 = vector.multi_reduction <maximumf>, %39, %cst_19 [1] : vector<8x8xf32> to vector<8xf32>
    %41 = vector.shape_cast %40 : vector<8xf32> to vector<8x1xf32>
    %42 = vector.broadcast %41 : vector<8x1xf32> to vector<8x8xf32>
    %43 = arith.subf %39, %42 : vector<8x8xf32>
    %44 = math.exp %43 : vector<8x8xf32>
    %cst_20 = arith.constant dense<0.000000e+00> : vector<8xf32>
    %45 = vector.multi_reduction <add>, %44, %cst_20 [1] : vector<8x8xf32> to vector<8xf32>
    %46 = vector.shape_cast %45 : vector<8xf32> to vector<8x1xf32>
    %47 = tpu.reciprocal %46 {approx = true} : vector<8x1xf32> -> vector<8x1xf32>
    %48 = vector.broadcast %47 : vector<8x1xf32> to vector<8x8xf32>
    %49 = arith.mulf %44, %48 : vector<8x8xf32>
    %50 = arith.addf %33, %49 : vector<8x8xf32>
    %cst_21 = arith.constant dense<0.000000e+00> : vector<8x8xf32>
    %51 = tpu.matmul %49, %38, %cst_21 {dimension_numbers = #tpu.dot_dimension_numbers<[1], [0], [0], [1], [0, 0, 1, 1], [], []>} : vector<8x8xf32>, vector<8x8xf32>, vector<8x8xf32> -> vector<8x8xf32>
    %c0_22 = arith.constant 0 : index
    %c8 = arith.constant 8 : index
    %52 = vector.load %arg10[%c0_22, %c8] : memref<8x32xf32, #tpu.memory_space<vmem>>, vector<8x8xf32>
    tpu.vector_store %arg10[%c0_22, %c8], %51 {strides = array<i32>} : memref<8x32xf32, #tpu.memory_space<vmem>>, vector<8x8xf32>,
    %53 = vector.extract_strided_slice %13 {offsets = [0, 16], sizes = [8, 8], strides = [1, 1]} : vector<8x32xf32> to vector<8x8xf32>
    %54 = vector.extract_strided_slice %15 {offsets = [0, 16], sizes = [8, 8], strides = [1, 1]} : vector<8x32xf32> to vector<8x8xf32>
    %55 = vector.extract_strided_slice %17 {offsets = [0, 16], sizes = [8, 8], strides = [1, 1]} : vector<8x32xf32> to vector<8x8xf32>
    %cst_23 = arith.constant dense<0.000000e+00> : vector<8x8xf32>
    %56 = tpu.matmul %53, %54, %cst_23 {dimension_numbers = #tpu.dot_dimension_numbers<[1], [1], [0], [0], [0, 0, 1, 0], [], []>} : vector<8x8xf32>, vector<8x8xf32>, vector<8x8xf32> -> vector<8x8xf32>
    %cst_24 = arith.constant dense<0xFF800000> : vector<8xf32>
    %57 = vector.multi_reduction <maximumf>, %56, %cst_24 [1] : vector<8x8xf32> to vector<8xf32>
    %58 = vector.shape_cast %57 : vector<8xf32> to vector<8x1xf32>
    %59 = vector.broadcast %58 : vector<8x1xf32> to vector<8x8xf32>
    %60 = arith.subf %56, %59 : vector<8x8xf32>
    %61 = math.exp %60 : vector<8x8xf32>
    %cst_25 = arith.constant dense<0.000000e+00> : vector<8xf32>
    %62 = vector.multi_reduction <add>, %61, %cst_25 [1] : vector<8x8xf32> to vector<8xf32>
    %63 = vector.shape_cast %62 : vector<8xf32> to vector<8x1xf32>
    %64 = tpu.reciprocal %63 {approx = true} : vector<8x1xf32> -> vector<8x1xf32>
    %65 = vector.broadcast %64 : vector<8x1xf32> to vector<8x8xf32>
    %66 = arith.mulf %61, %65 : vector<8x8xf32>
    %67 = arith.addf %50, %66 : vector<8x8xf32>
    %cst_26 = arith.constant dense<0.000000e+00> : vector<8x8xf32>
    %68 = tpu.matmul %66, %55, %cst_26 {dimension_numbers = #tpu.dot_dimension_numbers<[1], [0], [0], [1], [0, 0, 1, 1], [], []>} : vector<8x8xf32>, vector<8x8xf32>, vector<8x8xf32> -> vector<8x8xf32>
    %c0_27 = arith.constant 0 : index
    %c16 = arith.constant 16 : index
    %69 = vector.load %arg10[%c0_27, %c16] : memref<8x32xf32, #tpu.memory_space<vmem>>, vector<8x8xf32>
    tpu.vector_store %arg10[%c0_27, %c16], %68 {strides = array<i32>} : memref<8x32xf32, #tpu.memory_space<vmem>>, vector<8x8xf32>,
    %70 = vector.extract_strided_slice %13 {offsets = [0, 24], sizes = [8, 8], strides = [1, 1]} : vector<8x32xf32> to vector<8x8xf32>
    %71 = vector.extract_strided_slice %15 {offsets = [0, 24], sizes = [8, 8], strides = [1, 1]} : vector<8x32xf32> to vector<8x8xf32>
    %72 = vector.extract_strided_slice %17 {offsets = [0, 24], sizes = [8, 8], strides = [1, 1]} : vector<8x32xf32> to vector<8x8xf32>
    %cst_28 = arith.constant dense<0.000000e+00> : vector<8x8xf32>
    %73 = tpu.matmul %70, %71, %cst_28 {dimension_numbers = #tpu.dot_dimension_numbers<[1], [1], [0], [0], [0, 0, 1, 0], [], []>} : vector<8x8xf32>, vector<8x8xf32>, vector<8x8xf32> -> vector<8x8xf32>
    %cst_29 = arith.constant dense<0xFF800000> : vector<8xf32>
    %74 = vector.multi_reduction <maximumf>, %73, %cst_29 [1] : vector<8x8xf32> to vector<8xf32>
    %75 = vector.shape_cast %74 : vector<8xf32> to vector<8x1xf32>
    %76 = vector.broadcast %75 : vector<8x1xf32> to vector<8x8xf32>
    %77 = arith.subf %73, %76 : vector<8x8xf32>
    %78 = math.exp %77 : vector<8x8xf32>
    %cst_30 = arith.constant dense<0.000000e+00> : vector<8xf32>
    %79 = vector.multi_reduction <add>, %78, %cst_30 [1] : vector<8x8xf32> to vector<8xf32>
    %80 = vector.shape_cast %79 : vector<8xf32> to vector<8x1xf32>
    %81 = tpu.reciprocal %80 {approx = true} : vector<8x1xf32> -> vector<8x1xf32>
    %82 = vector.broadcast %81 : vector<8x1xf32> to vector<8x8xf32>
    %83 = arith.mulf %78, %82 : vector<8x8xf32>
    %84 = arith.addf %67, %83 : vector<8x8xf32>
    %cst_31 = arith.constant dense<0.000000e+00> : vector<8x8xf32>
    %85 = tpu.matmul %83, %72, %cst_31 {dimension_numbers = #tpu.dot_dimension_numbers<[1], [0], [0], [1], [0, 0, 1, 1], [], []>} : vector<8x8xf32>, vector<8x8xf32>, vector<8x8xf32> -> vector<8x8xf32>
    %c0_32 = arith.constant 0 : index
    %c24 = arith.constant 24 : index
    %86 = vector.load %arg10[%c0_32, %c24] : memref<8x32xf32, #tpu.memory_space<vmem>>, vector<8x8xf32>
    tpu.vector_store %arg10[%c0_32, %c24], %85 {strides = array<i32>} : memref<8x32xf32, #tpu.memory_space<vmem>>, vector<8x8xf32>,
    %c0_33 = arith.constant 0 : index
    %c0_34 = arith.constant 0 : index
    %87 = vector.load %arg10[%c0_33, %c0_34] : memref<8x32xf32, #tpu.memory_space<vmem>>, vector<8x32xf32>
    %c0_35 = arith.constant 0 : index
    %c0_36 = arith.constant 0 : index
    %88 = vector.load %arg5[%c0_35, %c0_36] : memref<32x32xf32, #tpu.memory_space<vmem>>, vector<32x32xf32>
    %cst_37 = arith.constant dense<0.000000e+00> : vector<8x32xf32>
    %89 = tpu.matmul %87, %88, %cst_37 {dimension_numbers = #tpu.dot_dimension_numbers<[1], [0], [0], [1], [0, 0, 1, 1], [], []>} : vector<8x32xf32>, vector<32x32xf32>, vector<8x32xf32> -> vector<8x32xf32>
    %c0_38 = arith.constant 0 : index
    %c0_39 = arith.constant 0 : index
    %c0_40 = arith.constant 0 : index
    %90 = vector.load %arg6[%c0_38, %c0_39, %c0_40] : memref<1x8x32xf32, #tpu.memory_space<vmem>>, vector<1x8x32xf32>
    %91 = vector.shape_cast %90 : vector<1x8x32xf32> to vector<8x32xf32>
    %92 = arith.addf %89, %91 : vector<8x32xf32>
    %c0_41 = arith.constant 0 : index
    %c0_42 = arith.constant 0 : index
    %c0_43 = arith.constant 0 : index
    %93 = vector.load %arg7[%c0_41, %c0_42, %c0_43] : memref<1x8x32xf32, #tpu.memory_space<vmem>>, vector<1x8x32xf32>
    %94 = vector.shape_cast %93 : vector<1x8x32xf32> to vector<8x32xf32>
    %95 = vector.shape_cast %92 : vector<8x32xf32> to vector<1x8x32xf32>
    tpu.vector_store %arg7[%c0_41, %c0_42, %c0_43], %95 {strides = array<i32>} : memref<1x8x32xf32, #tpu.memory_space<vmem>>, vector<1x8x32xf32>,
    %cst_44 = arith.constant 2.500000e-01 : f32
    %96 = vector.broadcast %cst_44 : f32 to vector<8x8xf32>
    %97 = arith.mulf %84, %96 : vector<8x8xf32>
    %c0_45 = arith.constant 0 : index
    %c0_46 = arith.constant 0 : index
    %c0_47 = arith.constant 0 : index
    %98 = vector.load %arg8[%c0_45, %c0_46, %c0_47] : memref<1x8x8xf32, #tpu.memory_space<vmem>>, vector<1x8x8xf32>
    %99 = vector.shape_cast %98 : vector<1x8x8xf32> to vector<8x8xf32>
    %100 = vector.shape_cast %97 : vector<8x8xf32> to vector<1x8x8xf32>
    tpu.vector_store %arg8[%c0_45, %c0_46, %c0_47], %100 {strides = array<i32>} : memref<1x8x8xf32, #tpu.memory_space<vmem>>, vector<1x8x8xf32>,
    return
  }
  func.func @transform_0(%arg0: i32, %arg1: i32) -> (i32, i32, i32) {
    %c0_i32 = arith.constant 0 : i32
    %c0_i32_0 = arith.constant 0 : i32
    %c0_i32_1 = arith.constant 0 : i32
    return %arg0, %c0_i32, %c0_i32_0 : i32, i32, i32
  }
  func.func @transform_1(%arg0: i32, %arg1: i32) -> (i32, i32) {
    %c0_i32 = arith.constant 0 : i32
    %c0_i32_0 = arith.constant 0 : i32
    %c0_i32_1 = arith.constant 0 : i32
    return %c0_i32, %c0_i32_0 : i32, i32
  }
  func.func @transform_2(%arg0: i32, %arg1: i32) -> (i32, i32) {
    %c0_i32 = arith.constant 0 : i32
    %c0_i32_0 = arith.constant 0 : i32
    %c0_i32_1 = arith.constant 0 : i32
    return %c0_i32, %c0_i32_0 : i32, i32
  }
  func.func @transform_3(%arg0: i32, %arg1: i32) -> (i32, i32) {
    %c0_i32 = arith.constant 0 : i32
    %c0_i32_0 = arith.constant 0 : i32
    %c0_i32_1 = arith.constant 0 : i32
    return %c0_i32, %c0_i32_0 : i32, i32
  }
  func.func @transform_4(%arg0: i32, %arg1: i32) -> (i32, i32, i32) {
    %c0_i32 = arith.constant 0 : i32
    %c0_i32_0 = arith.constant 0 : i32
    return %arg0, %arg1, %c0_i32 : i32, i32, i32
  }
  func.func @transform_5(%arg0: i32, %arg1: i32) -> (i32, i32, i32) {
    %c0_i32 = arith.constant 0 : i32
    %c0_i32_0 = arith.constant 0 : i32
    return %arg0, %arg1, %c0_i32 : i32, i32, i32
  }
  func.func @transform_6(%arg0: i32, %arg1: i32) -> (i32, i32, i32) {
    %c0_i32 = arith.constant 0 : i32
    %c0_i32_0 = arith.constant 0 : i32
    return %arg0, %arg1, %c0_i32 : i32, i32, i32
  }
}

</mosaic_0001>

<llo_original>
// kernel: tpu_custom_call.1
$region0: #{tpu_custom_call.1}
  #allocation0 [shape = 'u32[]', space=smem, size = 0x4, offset = 0x4, fixed_abs, tag = 'smem constant byte address 0x4 - core index']
  #allocation1 [shape = 'u32[72,128]{1,0:T(1,128)}', space=vmem, size = 0x9000, scoped, tag = 'internal scratch']
  #allocation2 [shape = 'f32[2,8,32]{2,1,0:T(8,128)}', space=vmem, size = 0x2000, scoped, tag = 'scratch operand']
  #allocation3 [shape = 'f32[8,32]{1,0:T(8,128)}', space=vmem, size = 0x1000, scoped, tag = 'scratch operand']
  %s0 = inlined_call_operand.hbm [shape: f32[2,8,32], index: 0, kind: input, shape index: {}]
  %s1 = inlined_call_operand.hbm [shape: f32[32,32], index: 1, kind: input, shape index: {}]
  %s2 = inlined_call_operand.hbm [shape: f32[32,64], index: 2, kind: input, shape index: {}]
  %s3 = inlined_call_operand.hbm [shape: f32[32,32], index: 3, kind: input, shape index: {}]
  %s4 = inlined_call_operand.hbm [shape: f32[2,8,32], index: 4, kind: input, shape index: {}]
  %s5 = inlined_call_operand.hbm [shape: f32[2,8,32], index: 5, kind: output, shape index: {0}]
  %s6 = inlined_call_operand.hbm [shape: f32[2,8,8], index: 6, kind: output, shape index: {1}]
  %7 = xla_tuple %s5, %s6
  %s8 = sld [smem:[#allocation0]]
  $region85: #{tpu_custom_call.1} parent=0
    _
  %s10 = ssub.s32 1, %s8
  %s11 = scalar_select 0, %s10, %s8
  $region1: #{tpu_custom_call.1} parent=0
    #allocation4 [shape = 'u8[8192]{0}', space=vmem, size = 0x2000, scoped, tag = 'input window, operand 0']
    #allocation5 [shape = 's32[2]{0}', space=sflag, size = 0x8, scoped, tag = 'scoped memory for tpu_custom_call.1']
    #allocation6 [shape = 's32[2]{0}', space=sflag, size = 0x8, scoped, tag = 'scoped memory for tpu_custom_call.1']
    #allocation7 [shape = 'u8[16384]{0}', space=vmem, size = 0x4000, scoped, tag = 'input window, operand 1, single buffered']
    #allocation8 [shape = 's32[1]{0}', space=sflag, size = 0x4, scoped, tag = 'scoped memory for tpu_custom_call.1']
    #allocation9 [shape = 'u8[16384]{0}', space=vmem, size = 0x4000, scoped, tag = 'input window, operand 2, single buffered']
    #allocation10 [shape = 'u8[16384]{0}', space=vmem, size = 0x4000, scoped, tag = 'input window, operand 3, single buffered']
    #allocation11 [shape = 's32[1]{0}', space=sflag, size = 0x4, scoped, tag = 'scoped memory for tpu_custom_call.1']
    #allocation12 [shape = 'u8[8192]{0}', space=vmem, size = 0x2000, scoped, tag = 'input window, operand 4']
    #allocation13 [shape = 'u8[8192]{0}', space=vmem, size = 0x2000, scoped, tag = 'output window, operand 0']
    #allocation14 [shape = 'u8[8192]{0}', space=vmem, size = 0x2000, scoped, tag = 'output window, operand 1']
    #allocation15 [shape = 's32[2]{0}', space=sflag, size = 0x8, scoped, tag = 'scoped memory for tpu_custom_call.1']
    %12 = vsyncpa [#allocation5], 0
    %s13 = scalar_lea.sflag [#allocation5], 1
    %14 = vsyncpa %s13, 0
    %15 = vsyncpa [#allocation8], 0
    %16 = vsyncpa [#allocation11], 0
    %17 = vsyncpa [#allocation6], 0
    %s18 = scalar_lea.sflag [#allocation6], 1
    %19 = vsyncpa %s18, 0
    %20 = vsyncpa [#allocation15], 0
    %s21 = scalar_lea.sflag [#allocation15], 1
    %22 = vsyncpa %s21, 0
    loop: start=0, step=1, limit=4
    $region2: #{tpu_custom_call.1} parent=1 // loop_pre_header
      _
    $region3: #{tpu_custom_call.1} parent=1 // loop_header
      %s24 = sphi 0, %s28
      %p25 = scmp.ge.s32.totalorder %s24, 4
      %s31 = sphi 0, %s43
      %s32 = sphi 0, %s39
      %s33 = sphi 0, %s31
      %s34 = sphi 0, %s32
      %s35 = sphi 0, %s33
      %s36 = sphi 0, %s34
      %s46 = sphi 0, %s48
      %s49 = sphi 0, %s46
      %s50 = sphi 0, %s49
      %s66 = sphi 0, %s50
      %s70 = sphi 0, %s70
      %s72 = sphi 0, %s70
      %s73 = sphi 0, %s72
      %s87 = sphi 0, %s73
      %s91 = sphi 0, %s91
      %s93 = sphi 0, %s91
      %s94 = sphi 0, %s93
      %s108 = sphi 0, %s94
      %s112 = sphi 0, %s112
      %s114 = sphi 0, %s112
      %s115 = sphi 0, %s114
      %s129 = sphi 0, %s115
      %s137 = sphi 0, %s139
      %s140 = sphi 0, %s137
      %s141 = sphi 0, %s140
      %s157 = sphi 0, %s141
      %s165 = sphi 0, %s167
      %s168 = sphi 0, %s165
      %s169 = sphi 0, %s168
      %s185 = sphi 0, %s169
      %s193 = sphi 0, %s195
      %s196 = sphi 0, %s193
      %s197 = sphi 0, %s196
      %s213 = sphi 0, %s197
    $region4: #{tpu_custom_call.1} parent=1 // loop_header_branch
      %27 = sbr.rel (%p25) target = $region8
    $region5: #{tpu_custom_call.1} parent=1 // loop_body
      %s29 = ssub.s32 %s24, 1
      %s30 = ssub.s32 %s24, 2
      %s37 = sadd.s32 1, %s32
      %p38 = scmp.ge.s32.totalorder %s37, 1
      %s39 = scalar_select %p38, 0, %s37
      %s40 = sadd.s32 1, %s31
      %s41 = scalar_select %p38, %s40, %s31
      %p42 = scmp.ge.s32.totalorder %s41, 2
      %s43 = scalar_select %p42, 0, %s41
      %s44 = ssub.s32 %s31, %s43
      %p45 = scmp.eq.s32.totalorder %s44, 0
      %s47 = sadd.s32 %s46, 1
      %s48 = scalar_select %p45, %s46, %s47
      %p51 = pneg %p45
      %p52 = scmp.eq.s32.totalorder %s24, 1
      %p53 = por %p51, %p52
      %p54 = scmp.ne.s32.totalorder %s46, %s49
      %p55 = scmp.eq.s32.totalorder %s24, 0
      %p56 = por %p54, %p55
      %p57 = scmp.ne.s32.totalorder %s46, %s49
      %p58 = scmp.eq.s32.totalorder %s29, 1
      %p59 = por %p57, %p58
      %p60 = scmp.ne.s32.totalorder %s49, %s50
      %p61 = scmp.eq.s32.totalorder %s29, 0
      %p62 = por %p60, %p61
      %p63 = scmp.ne.s32.totalorder %s49, %s50
      %p64 = scmp.eq.s32.totalorder %s30, 1
      %p65 = por %p63, %p64
      %p67 = scmp.ne.s32.totalorder %s50, %s66
      %p68 = scmp.eq.s32.totalorder %s30, 0
      %p69 = por %p67, %p68
      %s71 = sadd.s32 %s70, 1
      %p74 = scmp.eq.s32.totalorder %s24, 1
      %p75 = scmp.ne.s32.totalorder %s70, %s72
      %p76 = scmp.eq.s32.totalorder %s24, 0
      %p77 = por %p75, %p76
      %p78 = scmp.ne.s32.totalorder %s70, %s72
      %p79 = scmp.eq.s32.totalorder %s29, 1
      %p80 = por %p78, %p79
      %p81 = scmp.ne.s32.totalorder %s72, %s73
      %p82 = scmp.eq.s32.totalorder %s29, 0
      %p83 = por %p81, %p82
      %p84 = scmp.ne.s32.totalorder %s72, %s73
      %p85 = scmp.eq.s32.totalorder %s30, 1
      %p86 = por %p84, %p85
      %p88 = scmp.ne.s32.totalorder %s73, %s87
      %p89 = scmp.eq.s32.totalorder %s30, 0
      %p90 = por %p88, %p89
      %s92 = sadd.s32 %s91, 1
      %p95 = scmp.eq.s32.totalorder %s24, 1
      %p96 = scmp.ne.s32.totalorder %s91, %s93
      %p97 = scmp.eq.s32.totalorder %s24, 0
      %p98 = por %p96, %p97
      %p99 = scmp.ne.s32.totalorder %s91, %s93
      %p100 = scmp.eq.s32.totalorder %s29, 1
      %p101 = por %p99, %p100
      %p102 = scmp.ne.s32.totalorder %s93, %s94
      %p103 = scmp.eq.s32.totalorder %s29, 0
      %p104 = por %p102, %p103
      %p105 = scmp.ne.s32.totalorder %s93, %s94
      %p106 = scmp.eq.s32.totalorder %s30, 1
      %p107 = por %p105, %p106
      %p109 = scmp.ne.s32.totalorder %s94, %s108
      %p110 = scmp.eq.s32.totalorder %s30, 0
      %p111 = por %p109, %p110
      %s113 = sadd.s32 %s112, 1
      %p116 = scmp.eq.s32.totalorder %s24, 1
      %p117 = scmp.ne.s32.totalorder %s112, %s114
      %p118 = scmp.eq.s32.totalorder %s24, 0
      %p119 = por %p117, %p118
      %p120 = scmp.ne.s32.totalorder %s112, %s114
      %p121 = scmp.eq.s32.totalorder %s29, 1
      %p122 = por %p120, %p121
      %p123 = scmp.ne.s32.totalorder %s114, %s115
      %p124 = scmp.eq.s32.totalorder %s29, 0
      %p125 = por %p123, %p124
      %p126 = scmp.ne.s32.totalorder %s114, %s115
      %p127 = scmp.eq.s32.totalorder %s30, 1
      %p128 = por %p126, %p127
      %p130 = scmp.ne.s32.totalorder %s115, %s129
      %p131 = scmp.eq.s32.totalorder %s30, 0
      %p132 = por %p130, %p131
      %s133 = ssub.s32 %s31, %s43
      %s134 = ssub.s32 %s32, %s39
      %s135 = sor.u32 %s133, %s134
      %p136 = scmp.eq.s32.totalorder %s135, 0
      %s138 = sadd.s32 %s137, 1
      %s139 = scalar_select %p136, %s137, %s138
      %p142 = pneg %p136
      %p143 = scmp.eq.s32.totalorder %s24, 1
      %p144 = por %p142, %p143
      %p145 = scmp.ne.s32.totalorder %s137, %s140
      %p146 = scmp.eq.s32.totalorder %s24, 0
      %p147 = por %p145, %p146
      %p148 = scmp.ne.s32.totalorder %s137, %s140
      %p149 = scmp.eq.s32.totalorder %s29, 1
      %p150 = por %p148, %p149
      %p151 = scmp.ne.s32.totalorder %s140, %s141
      %p152 = scmp.eq.s32.totalorder %s29, 0
      %p153 = por %p151, %p152
      %p154 = scmp.ne.s32.totalorder %s140, %s141
      %p155 = scmp.eq.s32.totalorder %s30, 1
      %p156 = por %p154, %p155
      %p158 = scmp.ne.s32.totalorder %s141, %s157
      %p159 = scmp.eq.s32.totalorder %s30, 0
      %p160 = por %p158, %p159
      %s161 = ssub.s32 %s31, %s43
      %s162 = ssub.s32 %s32, %s39
      %s163 = sor.u32 %s161, %s162
      %p164 = scmp.eq.s32.totalorder %s163, 0
      %s166 = sadd.s32 %s165, 1
      %s167 = scalar_select %p164, %s165, %s166
      %p170 = pneg %p164
      %p171 = scmp.eq.s32.totalorder %s24, 1
      %p172 = por %p170, %p171
      %p173 = scmp.ne.s32.totalorder %s165, %s168
      %p174 = scmp.eq.s32.totalorder %s24, 0
      %p175 = por %p173, %p174
      %p176 = scmp.ne.s32.totalorder %s165, %s168
      %p177 = scmp.eq.s32.totalorder %s29, 1
      %p178 = por %p176, %p177
      %p179 = scmp.ne.s32.totalorder %s168, %s169
      %p180 = scmp.eq.s32.totalorder %s29, 0
      %p181 = por %p179, %p180
      %p182 = scmp.ne.s32.totalorder %s168, %s169
      %p183 = scmp.eq.s32.totalorder %s30, 1
      %p184 = por %p182, %p183
      %p186 = scmp.ne.s32.totalorder %s169, %s185
      %p187 = scmp.eq.s32.totalorder %s30, 0
      %p188 = por %p186, %p187
      %s189 = ssub.s32 %s31, %s43
      %s190 = ssub.s32 %s32, %s39
      %s191 = sor.u32 %s189, %s190
      %p192 = scmp.eq.s32.totalorder %s191, 0
      %s194 = sadd.s32 %s193, 1
      %s195 = scalar_select %p192, %s193, %s194
      %p198 = pneg %p192
      %p199 = scmp.eq.s32.totalorder %s24, 1
      %p200 = por %p198, %p199
      %p201 = scmp.ne.s32.totalorder %s193, %s196
      %p202 = scmp.eq.s32.totalorder %s24, 0
      %p203 = por %p201, %p202
      %p204 = scmp.ne.s32.totalorder %s193, %s196
      %p205 = scmp.eq.s32.totalorder %s29, 1
      %p206 = por %p204, %p205
      %p207 = scmp.ne.s32.totalorder %s196, %s197
      %p208 = scmp.eq.s32.totalorder %s29, 0
      %p209 = por %p207, %p208
      %p210 = scmp.ne.s32.totalorder %s196, %s197
      %p211 = scmp.eq.s32.totalorder %s30, 1
      %p212 = por %p210, %p211
      %p214 = scmp.ne.s32.totalorder %s197, %s213
      %p215 = scmp.eq.s32.totalorder %s30, 0
      %p216 = por %p214, %p215
      %p217 = scmp.le.s32.totalorder 1, %s24
      %p218 = scmp.lt.s32.totalorder %s24, 3
      %p219 = pnand %p217, %p218
      %p220 = pneg %p219
      // Predicated region
      $region9: #{tpu_custom_call.1} parent=5 // pred_check
        _
      $region10: #{tpu_custom_call.1} parent=5 // pred_check_branch
        %222 = sbr.rel (%p219) target = $region12
      $region11: #{tpu_custom_call.1} parent=5 // pred_region
        %s223 = ssub.s32 %s24, 1
        // Predicated region
        $region13: #{tpu_custom_call.1} parent=11 // pred_check
          %p224 = pneg %p83
        $region14: #{tpu_custom_call.1} parent=11 // pred_check_branch
          %226 = sbr.rel (%p224) target = $region16
        $region15: #{tpu_custom_call.1} parent=11 // pred_region
          %228 = vsyncadd [#allocation8], 0
          %s229 = sshll.u32 %s1, 4
          %s230 = int_to_ptr.hbm [resolvable:$true] %s229
          %s231 = sshll.u32 [#allocation7], 4
          %s232 = int_to_ptr.vmem [resolvable:$true] %s231
          %237 = dma.hbm_to_vmem [thread:$0]  %s230, 512, %s232, [#allocation8], 128, 128, 8
        $region16: #{tpu_custom_call.1} parent=11 // pred_fallthru
          _
        // Predicated region
        $region17: #{tpu_custom_call.1} parent=11 // pred_check
          %p238 = pneg %p104
        $region18: #{tpu_custom_call.1} parent=11 // pred_check_branch
          %240 = sbr.rel (%p238) target = $region20
        $region19: #{tpu_custom_call.1} parent=11 // pred_region
          %242 = vsyncadd [#allocation8], 0
          %s243 = sshll.u32 %s2, 4
          %s244 = int_to_ptr.hbm [resolvable:$true] %s243
          %s245 = sshll.u32 [#allocation9], 4
          %s246 = int_to_ptr.vmem [resolvable:$true] %s245
          %251 = dma.hbm_to_vmem [thread:$0]  %s244, 512, %s246, [#allocation8], 128, 128, 8
        $region20: #{tpu_custom_call.1} parent=11 // pred_fallthru
          _
        // Predicated region
        $region21: #{tpu_custom_call.1} parent=11 // pred_check
          %p252 = pneg %p125
        $region22: #{tpu_custom_call.1} parent=11 // pred_check_branch
          %254 = sbr.rel (%p252) target = $region24
        $region23: #{tpu_custom_call.1} parent=11 // pred_region
          %256 = vsyncadd [#allocation11], 0
          %s257 = sshll.u32 %s3, 4
          %s258 = int_to_ptr.hbm [resolvable:$true] %s257
          %s259 = sshll.u32 [#allocation10], 4
          %s260 = int_to_ptr.vmem [resolvable:$true] %s259
          %265 = dma.hbm_to_vmem [thread:$0]  %s258, 512, %s260, [#allocation11], 128, 128, 8
        $region24: #{tpu_custom_call.1} parent=11 // pred_fallthru
          _
      $region12: #{tpu_custom_call.1} parent=5 // pred_fallthru
        _
      %p266 = scmp.lt.s32.totalorder %s24, 2
      // Predicated region
      $region25: #{tpu_custom_call.1} parent=5 // pred_check
        %p267 = pneg %p266
      $region26: #{tpu_custom_call.1} parent=5 // pred_check_branch
        %269 = sbr.rel (%p267) target = $region28
      $region27: #{tpu_custom_call.1} parent=5 // pred_region
        // Predicated region
        $region29: #{tpu_custom_call.1} parent=27 // pred_check
          %p270 = pneg %p56
        $region30: #{tpu_custom_call.1} parent=27 // pred_check_branch
          %272 = sbr.rel (%p270) target = $region32
        $region31: #{tpu_custom_call.1} parent=27 // pred_region
          %s273 = sand.u32 %s24, 1
          %s274 = scalar_lea.sflag [#allocation5], %s273
          %s275 = sand.u32 %s46, 1
          %s276 = smul.addr %s275, 8
          %s277 = scalar_lea.vmem [#allocation4], %s276
          %279 = vsyncadd %s274, 0
          %s280 = smul.addr %s31, 8
          %s281 = scalar_lea.hbm %s0, %s280
          %s283 = sshll.u32 %s281, 4
          %s284 = int_to_ptr.hbm [resolvable:$true] %s283
          %s285 = sshll.u32 %s277, 4
          %s286 = int_to_ptr.vmem [resolvable:$true] %s285
          %288 = dma.hbm_to_vmem [thread:$0]  %s284, 128, %s286, %s274
        $region32: #{tpu_custom_call.1} parent=27 // pred_fallthru
          _
        // Predicated region
        $region33: #{tpu_custom_call.1} parent=27 // pred_check
          %p289 = pneg %p147
        $region34: #{tpu_custom_call.1} parent=27 // pred_check_branch
          %291 = sbr.rel (%p289) target = $region36
        $region35: #{tpu_custom_call.1} parent=27 // pred_region
          %s292 = sand.u32 %s24, 1
          %s293 = scalar_lea.sflag [#allocation5], %s292
          %s294 = sand.u32 %s137, 1
          %s295 = smul.addr %s294, 8
          %s296 = scalar_lea.vmem [#allocation12], %s295
          %298 = vsyncadd %s293, 0
          %s299 = sadd.s32 %s32, %s31
          %s300 = smul.addr %s299, 8
          %s301 = scalar_lea.hbm %s4, %s300
          %s303 = sshll.u32 %s301, 4
          %s304 = int_to_ptr.hbm [resolvable:$true] %s303
          %s305 = sshll.u32 %s296, 4
          %s306 = int_to_ptr.vmem [resolvable:$true] %s305
          %308 = dma.hbm_to_vmem [thread:$0]  %s304, 128, %s306, %s293
        $region36: #{tpu_custom_call.1} parent=27 // pred_fallthru
          _
      $region28: #{tpu_custom_call.1} parent=5 // pred_fallthru
        _
      %p309 = scmp.le.s32.totalorder 1, %s24
      %p310 = scmp.lt.s32.totalorder %s24, 3
      %p311 = pnand %p309, %p310
      %p312 = pneg %p311
      // Predicated region
      $region37: #{tpu_custom_call.1} parent=5 // pred_check
        _
      $region38: #{tpu_custom_call.1} parent=5 // pred_check_branch
        %314 = sbr.rel (%p311) target = $region40
      $region39: #{tpu_custom_call.1} parent=5 // pred_region
        %s315 = ssub.s32 %s24, 1
        %s316 = sand.u32 %s29, 1
        %s317 = scalar_lea.sflag [#allocation5], %s316
        %s318 = sand.u32 %s49, 1
        %s319 = smul.addr %s318, 8
        %s320 = scalar_lea.vmem [#allocation4], %s319
        // Predicated region
        $region41: #{tpu_custom_call.1} parent=39 // pred_check
          %p321 = pneg %p62
        $region42: #{tpu_custom_call.1} parent=39 // pred_check_branch
          %323 = sbr.rel (%p321) target = $region44
        $region43: #{tpu_custom_call.1} parent=39 // pred_region
          %325 = dma.done %s317, 128
        $region44: #{tpu_custom_call.1} parent=39 // pred_fallthru
          _
        // Predicated region
        $region45: #{tpu_custom_call.1} parent=39 // pred_check
          %p326 = pneg %p83
        $region46: #{tpu_custom_call.1} parent=39 // pred_check_branch
          %328 = sbr.rel (%p326) target = $region48
        $region47: #{tpu_custom_call.1} parent=39 // pred_region
          %330 = dma.done [#allocation8], 512
        $region48: #{tpu_custom_call.1} parent=39 // pred_fallthru
          _
        // Predicated region
        $region49: #{tpu_custom_call.1} parent=39 // pred_check
          %p331 = pneg %p104
        $region50: #{tpu_custom_call.1} parent=39 // pred_check_branch
          %333 = sbr.rel (%p331) target = $region52
        $region51: #{tpu_custom_call.1} parent=39 // pred_region
          %335 = dma.done [#allocation8], 512
        $region52: #{tpu_custom_call.1} parent=39 // pred_fallthru
          _
        // Predicated region
        $region53: #{tpu_custom_call.1} parent=39 // pred_check
          %p336 = pneg %p125
        $region54: #{tpu_custom_call.1} parent=39 // pred_check_branch
          %338 = sbr.rel (%p336) target = $region56
        $region55: #{tpu_custom_call.1} parent=39 // pred_region
          %340 = dma.done [#allocation11], 512
        $region56: #{tpu_custom_call.1} parent=39 // pred_fallthru
          _
        %s341 = sand.u32 %s29, 1
        %s342 = scalar_lea.sflag [#allocation5], %s341
        %s343 = sand.u32 %s140, 1
        %s344 = smul.addr %s343, 8
        %s345 = scalar_lea.vmem [#allocation12], %s344
        // Predicated region
        $region57: #{tpu_custom_call.1} parent=39 // pred_check
          %p346 = pneg %p153
        $region58: #{tpu_custom_call.1} parent=39 // pred_check_branch
          %348 = sbr.rel (%p346) target = $region60
        $region59: #{tpu_custom_call.1} parent=39 // pred_region
          %350 = dma.done %s342, 128
        $region60: #{tpu_custom_call.1} parent=39 // pred_fallthru
          _
        %s351 = sand.u32 %s29, 1
        %s352 = scalar_lea.sflag [#allocation5], %s351
        %s353 = sand.u32 %s49, 1
        %s354 = smul.addr %s353, 8
        %s355 = scalar_lea.vmem [#allocation4], %s354
        %p356 = pneg %p62
        %p357 = pneg %p59
        %p358 = pneg %p83
        %p359 = pneg %p80
        %p360 = pneg %p104
        %p361 = pneg %p101
        %p362 = pneg %p125
        %p363 = pneg %p122
        %s364 = sand.u32 %s29, 1
        %s365 = scalar_lea.sflag [#allocation5], %s364
        %s366 = sand.u32 %s140, 1
        %s367 = smul.addr %s366, 8
        %s368 = scalar_lea.vmem [#allocation12], %s367
        %p369 = pneg %p153
        %p370 = pneg %p150
        %p371 = pneg %p181
        %p372 = pneg %p178
        %s373 = sand.u32 %s168, 1
        %s374 = scalar_lea.sflag [#allocation6], %s373
        %s375 = sand.u32 %s168, 1
        %s376 = smul.addr %s375, 8
        %s377 = scalar_lea.vmem [#allocation13], %s376
        %p378 = pneg %p209
        %p379 = pneg %p206
        %s380 = sand.u32 %s196, 1
        %s381 = scalar_lea.sflag [#allocation15], %s380
        %s382 = sand.u32 %s196, 1
        %s383 = smul.addr %s382, 8
        %s384 = scalar_lea.vmem [#allocation14], %s383
        %p385 = scmp.eq.s32.totalorder %s34, 0
        // Predicated region
        $region61: #{tpu_custom_call.1} parent=39 // pred_check
          %p386 = pneg %p385
        $region62: #{tpu_custom_call.1} parent=39 // pred_check_branch
          %388 = sbr.rel (%p386) target = $region64
        $region63: #{tpu_custom_call.1} parent=39 // pred_region
          %v389 = vld [vmem:[%s320] sm:$0xff]
          %v390 = vld [vmem:[#allocation9] sm:$0xff]
          %v391 = vld [vmem:[#allocation9 + $0x8] sm:$0xff]
          %v392 = vld [vmem:[#allocation9 + $0x10] sm:$0xff]
          %v393 = vld [vmem:[#allocation9 + $0x18] sm:$0xff]
          %vm394 = vcmask 261120
          %v396 = vsel %vm394, %v389, 0
          %398 = vmatpush.msra.mxu0 0.0
          %399 = vmatpush.msra.mxu0 0.0
          %400 = vmatpush.msra.mxu0 0.0
          %401 = vmatpush.msra.mxu0 0.0
          %402 = vmatpush.msra.mxu0 0.0
          %403 = vmatpush.msra.mxu0 0.0
          %404 = vmatpush.msra.mxu0 0.0
          %405 = vmatpush.msra.mxu0 0.0
          %406 = vmatpush.msra.mxu0 0.0
          %407 = vmatpush.msra.mxu0 0.0
          %408 = vmatpush.msra.mxu0 0.0
          %409 = vmatpush.msra.mxu0 0.0
          %410 = vmatpush.msra.mxu0 %v393
          %411 = vmatpush.msra.mxu0 %v392
          %412 = vmatpush.msra.mxu0 %v391
          %413 = vmatpush.msra.mxu0 %v390
          %414 = vmatmul.f32.gmra.mxu0 %v396
          %v415 = vpop.f32.mrf.mxu0
          %v416 = vadd.f32 0.0, %v415
          %417 = vdwg.mxu0
          %418 = vst.msk [vmem:[#allocation2] sm:$0xff] %vm394, %v416
          %420 = vrot.lane.b32.xlu0 %v416, 96
          %v421 = vpop.permute.xlu0 %420
          %s423 = scalar_lea.vmem [#allocation2], 8
          %424 = vst.msk [vmem:[%s423] sm:$0xff] %vm394, %v421
        $region64: #{tpu_custom_call.1} parent=39 // pred_fallthru
          _
        %s425 = smul.u32 %s34, 8
        %s426 = scalar_lea.vmem %s320, %s425 [#allocation4]
        %v427 = vld [vmem:[%s426] sm:$0xff]
        %v428 = vld [vmem:[#allocation7] sm:$0xff]
        %v429 = vld [vmem:[#allocation7 + $0x8] sm:$0xff]
        %v430 = vld [vmem:[#allocation7 + $0x10] sm:$0xff]
        %v431 = vld [vmem:[#allocation7 + $0x18] sm:$0xff]
        %vm432 = vcmask 261120
        %v434 = vsel %vm432, %v427, 0
        %436 = vmatpush.msra.mxu0 0.0
        %437 = vmatpush.msra.mxu0 0.0
        %438 = vmatpush.msra.mxu0 0.0
        %439 = vmatpush.msra.mxu0 0.0
        %440 = vmatpush.msra.mxu0 0.0
        %441 = vmatpush.msra.mxu0 0.0
        %442 = vmatpush.msra.mxu0 0.0
        %443 = vmatpush.msra.mxu0 0.0
        %444 = vmatpush.msra.mxu0 0.0
        %445 = vmatpush.msra.mxu0 0.0
        %446 = vmatpush.msra.mxu0 0.0
        %447 = vmatpush.msra.mxu0 0.0
        %448 = vmatpush.msra.mxu0 %v431
        %449 = vmatpush.msra.mxu0 %v430
        %450 = vmatpush.msra.mxu0 %v429
        %451 = vmatpush.msra.mxu0 %v428
        %452 = vmatmul.f32.gmra.mxu0 %v434
        %v453 = vpop.f32.mrf.mxu0
        %v454 = vadd.f32 0.0, %v453
        %455 = vdwg.mxu0
        %v456 = vmul.f32 %v454, 0.35355338
        %v457 = vld [vmem:[#allocation2] sm:$0xff]
        %s458 = scalar_lea.vmem [#allocation2], 8
        %v459 = vld [vmem:[%s458] sm:$0xff]
        %vm460 = vcmask 64512
        %v462 = vsel %vm460, %v456, 0
        %v465 = vsel %vm460, %v457, 0
        %467 = vmatpush.xpose.msra.mxu0 0.0
        %468 = vmatpush.xpose.msra.mxu0 0.0
        %469 = vmatpush.xpose.msra.mxu0 0.0
        %470 = vmatpush.xpose.msra.mxu0 0.0
        %471 = vmatpush.xpose.msra.mxu0 0.0
        %472 = vmatpush.xpose.msra.mxu0 0.0
        %473 = vmatpush.xpose.msra.mxu0 0.0
        %474 = vmatpush.xpose.msra.mxu0 0.0
        %475 = vmatpush.xpose.msra.mxu0 0.0
        %476 = vmatpush.xpose.msra.mxu0 0.0
        %477 = vmatpush.xpose.msra.mxu0 0.0
        %478 = vmatpush.xpose.msra.mxu0 0.0
        %479 = vmatpush.xpose.msra.mxu0 0.0
        %480 = vmatpush.xpose.msra.mxu0 0.0
        %481 = vmatpush.xpose.msra.mxu0 0.0
        %482 = vmatpush.xpose.msra.mxu0 %v465
        %483 = vmatmul.f32.gmra.mxu0 %v462
        %v484 = vpop.f32.mrf.mxu0
        %v485 = vadd.f32 0.0, %v484
        %486 = vdwg.mxu0
        %v487 = vsel %vm460, %v485, -inf
        %488 = vmax.xlane.f32.xlu0 %v487
        %v489 = vpop.xlane.xlu0 %488
        %v490 = vsub.f32 %v485, %v489
        %v491 = vmul.f32 %v490, 1.442695
        %v492 = vpow.pop %v491
        %v493 = vsel %vm460, %v492, 0.0
        %494 = vadd.xlane.f32.xlu0 %v493
        %v495 = vpop.xlane.xlu0 %494
        %v496 = vrcp.pop %v495
        %v497 = vmul.f32 %v492, %v496
        %v498 = vadd.f32 %v497, 0.0
        %v500 = vsel %vm460, %v497, 0
        %502 = vmatpush.msra.mxu0 0.0
        %503 = vmatpush.msra.mxu0 0.0
        %504 = vmatpush.msra.mxu0 0.0
        %505 = vmatpush.msra.mxu0 0.0
        %506 = vmatpush.msra.mxu0 0.0
        %507 = vmatpush.msra.mxu0 0.0
        %508 = vmatpush.msra.mxu0 0.0
        %509 = vmatpush.msra.mxu0 0.0
        %510 = vmatpush.msra.mxu0 0.0
        %511 = vmatpush.msra.mxu0 0.0
        %512 = vmatpush.msra.mxu0 0.0
        %513 = vmatpush.msra.mxu0 0.0
        %514 = vmatpush.msra.mxu0 0.0
        %515 = vmatpush.msra.mxu0 0.0
        %516 = vmatpush.msra.mxu0 0.0
        %517 = vmatpush.msra.mxu0 %v459
        %518 = vmatmul.f32.gmra.mxu0 %v500
        %v519 = vpop.f32.mrf.mxu0
        %v520 = vadd.f32 0.0, %v519
        %521 = vdwg.mxu0
        %522 = vst.msk [vmem:[#allocation3] sm:$0xff] %vm460, %v520
        %523 = vrot.lane.b32.xlu0 %v456, 120
        %v524 = vpop.permute.xlu0 %523
        %525 = vrot.lane.b32.xlu0 %v457, 120
        %v526 = vpop.permute.xlu0 %525
        %v527 = vsel %vm460, %v524, 0
        %v529 = vsel %vm460, %v526, 0
        %531 = vmatpush.xpose.msra.mxu0 0.0
        %532 = vmatpush.xpose.msra.mxu0 0.0
        %533 = vmatpush.xpose.msra.mxu0 0.0
        %534 = vmatpush.xpose.msra.mxu0 0.0
        %535 = vmatpush.xpose.msra.mxu0 0.0
        %536 = vmatpush.xpose.msra.mxu0 0.0
        %537 = vmatpush.xpose.msra.mxu0 0.0
        %538 = vmatpush.xpose.msra.mxu0 0.0
        %539 = vmatpush.xpose.msra.mxu0 0.0
        %540 = vmatpush.xpose.msra.mxu0 0.0
        %541 = vmatpush.xpose.msra.mxu0 0.0
        %542 = vmatpush.xpose.msra.mxu0 0.0
        %543 = vmatpush.xpose.msra.mxu0 0.0
        %544 = vmatpush.xpose.msra.mxu0 0.0
        %545 = vmatpush.xpose.msra.mxu0 0.0
        %546 = vmatpush.xpose.msra.mxu0 %v529
        %547 = vmatmul.f32.gmra.mxu0 %v527
        %v548 = vpop.f32.mrf.mxu0
        %v549 = vadd.f32 0.0, %v548
        %550 = vdwg.mxu0
        %v551 = vsel %vm460, %v549, -inf
        %552 = vmax.xlane.f32.xlu0 %v551
        %v553 = vpop.xlane.xlu0 %552
        %v554 = vsub.f32 %v549, %v553
        %v555 = vmul.f32 %v554, 1.442695
        %v556 = vpow.pop %v555
        %v557 = vsel %vm460, %v556, 0.0
        %558 = vadd.xlane.f32.xlu0 %v557
        %v559 = vpop.xlane.xlu0 %558
        %v560 = vrcp.pop %v559
        %v561 = vmul.f32 %v556, %v560
        %v562 = vadd.f32 %v498, %v561
        %564 = vrot.lane.b32.xlu0 %v459, 120
        %v565 = vpop.permute.xlu0 %564
        %v568 = vsel %vm460, %v561, 0
        %570 = vmatpush.msra.mxu0 0.0
        %571 = vmatpush.msra.mxu0 0.0
        %572 = vmatpush.msra.mxu0 0.0
        %573 = vmatpush.msra.mxu0 0.0
        %574 = vmatpush.msra.mxu0 0.0
        %575 = vmatpush.msra.mxu0 0.0
        %576 = vmatpush.msra.mxu0 0.0
        %577 = vmatpush.msra.mxu0 0.0
        %578 = vmatpush.msra.mxu0 0.0
        %579 = vmatpush.msra.mxu0 0.0
        %580 = vmatpush.msra.mxu0 0.0
        %581 = vmatpush.msra.mxu0 0.0
        %582 = vmatpush.msra.mxu0 0.0
        %583 = vmatpush.msra.mxu0 0.0
        %584 = vmatpush.msra.mxu0 0.0
        %585 = vmatpush.msra.mxu0 %v565
        %586 = vmatmul.f32.gmra.mxu0 %v568
        %v587 = vpop.f32.mrf.mxu0
        %v588 = vadd.f32 0.0, %v587
        %589 = vdwg.mxu0
        %591 = vrot.lane.b32.xlu0 %v588, 8
        %v592 = vpop.permute.xlu0 %591
        %vm594 = vcmask 130112
        %595 = vst.msk [vmem:[#allocation3] sm:$0xff] %vm594, %v592
        %596 = vrot.lane.b32.xlu0 %v456, 112
        %v597 = vpop.permute.xlu0 %596
        %598 = vrot.lane.b32.xlu0 %v457, 112
        %v599 = vpop.permute.xlu0 %598
        %v600 = vsel %vm460, %v597, 0
        %v602 = vsel %vm460, %v599, 0
        %604 = vmatpush.xpose.msra.mxu0 0.0
        %605 = vmatpush.xpose.msra.mxu0 0.0
        %606 = vmatpush.xpose.msra.mxu0 0.0
        %607 = vmatpush.xpose.msra.mxu0 0.0
        %608 = vmatpush.xpose.msra.mxu0 0.0
        %609 = vmatpush.xpose.msra.mxu0 0.0
        %610 = vmatpush.xpose.msra.mxu0 0.0
        %611 = vmatpush.xpose.msra.mxu0 0.0
        %612 = vmatpush.xpose.msra.mxu0 0.0
        %613 = vmatpush.xpose.msra.mxu0 0.0
        %614 = vmatpush.xpose.msra.mxu0 0.0
        %615 = vmatpush.xpose.msra.mxu0 0.0
        %616 = vmatpush.xpose.msra.mxu0 0.0
        %617 = vmatpush.xpose.msra.mxu0 0.0
        %618 = vmatpush.xpose.msra.mxu0 0.0
        %619 = vmatpush.xpose.msra.mxu0 %v602
        %620 = vmatmul.f32.gmra.mxu0 %v600
        %v621 = vpop.f32.mrf.mxu0
        %v622 = vadd.f32 0.0, %v621
        %623 = vdwg.mxu0
        %v624 = vsel %vm460, %v622, -inf
        %625 = vmax.xlane.f32.xlu0 %v624
        %v626 = vpop.xlane.xlu0 %625
        %v627 = vsub.f32 %v622, %v626
        %v628 = vmul.f32 %v627, 1.442695
        %v629 = vpow.pop %v628
        %v630 = vsel %vm460, %v629, 0.0
        %631 = vadd.xlane.f32.xlu0 %v630
        %v632 = vpop.xlane.xlu0 %631
        %v633 = vrcp.pop %v632
        %v634 = vmul.f32 %v629, %v633
        %v635 = vadd.f32 %v562, %v634
        %636 = vrot.lane.b32.xlu0 %v459, 112
        %v637 = vpop.permute.xlu0 %636
        %v640 = vsel %vm460, %v634, 0
        %642 = vmatpush.msra.mxu0 0.0
        %643 = vmatpush.msra.mxu0 0.0
        %644 = vmatpush.msra.mxu0 0.0
        %645 = vmatpush.msra.mxu0 0.0
        %646 = vmatpush.msra.mxu0 0.0
        %647 = vmatpush.msra.mxu0 0.0
        %648 = vmatpush.msra.mxu0 0.0
        %649 = vmatpush.msra.mxu0 0.0
        %650 = vmatpush.msra.mxu0 0.0
        %651 = vmatpush.msra.mxu0 0.0
        %652 = vmatpush.msra.mxu0 0.0
        %653 = vmatpush.msra.mxu0 0.0
        %654 = vmatpush.msra.mxu0 0.0
        %655 = vmatpush.msra.mxu0 0.0
        %656 = vmatpush.msra.mxu0 0.0
        %657 = vmatpush.msra.mxu0 %v637
        %658 = vmatmul.f32.gmra.mxu0 %v640
        %v659 = vpop.f32.mrf.mxu0
        %v660 = vadd.f32 0.0, %v659
        %661 = vdwg.mxu0
        %663 = vrot.lane.b32.xlu0 %v660, 16
        %v664 = vpop.permute.xlu0 %663
        %vm666 = vcmask 195712
        %667 = vst.msk [vmem:[#allocation3] sm:$0xff] %vm666, %v664
        %668 = vrot.lane.b32.xlu0 %v456, 104
        %v669 = vpop.permute.xlu0 %668
        %670 = vrot.lane.b32.xlu0 %v457, 104
        %v671 = vpop.permute.xlu0 %670
        %v672 = vsel %vm460, %v669, 0
        %v674 = vsel %vm460, %v671, 0
        %676 = vmatpush.xpose.msra.mxu0 0.0
        %677 = vmatpush.xpose.msra.mxu0 0.0
        %678 = vmatpush.xpose.msra.mxu0 0.0
        %679 = vmatpush.xpose.msra.mxu0 0.0
        %680 = vmatpush.xpose.msra.mxu0 0.0
        %681 = vmatpush.xpose.msra.mxu0 0.0
        %682 = vmatpush.xpose.msra.mxu0 0.0
        %683 = vmatpush.xpose.msra.mxu0 0.0
        %684 = vmatpush.xpose.msra.mxu0 0.0
        %685 = vmatpush.xpose.msra.mxu0 0.0
        %686 = vmatpush.xpose.msra.mxu0 0.0
        %687 = vmatpush.xpose.msra.mxu0 0.0
        %688 = vmatpush.xpose.msra.mxu0 0.0
        %689 = vmatpush.xpose.msra.mxu0 0.0
        %690 = vmatpush.xpose.msra.mxu0 0.0
        %691 = vmatpush.xpose.msra.mxu0 %v674
        %692 = vmatmul.f32.gmra.mxu0 %v672
        %v693 = vpop.f32.mrf.mxu0
        %v694 = vadd.f32 0.0, %v693
        %695 = vdwg.mxu0
        %v696 = vsel %vm460, %v694, -inf
        %697 = vmax.xlane.f32.xlu0 %v696
        %v698 = vpop.xlane.xlu0 %697
        %v699 = vsub.f32 %v694, %v698
        %v700 = vmul.f32 %v699, 1.442695
        %v701 = vpow.pop %v700
        %v702 = vsel %vm460, %v701, 0.0
        %703 = vadd.xlane.f32.xlu0 %v702
        %v704 = vpop.xlane.xlu0 %703
        %v705 = vrcp.pop %v704
        %v706 = vmul.f32 %v701, %v705
        %v707 = vadd.f32 %v635, %v706
        %708 = vrot.lane.b32.xlu0 %v459, 104
        %v709 = vpop.permute.xlu0 %708
        %v712 = vsel %vm460, %v706, 0
        %714 = vmatpush.msra.mxu0 0.0
        %715 = vmatpush.msra.mxu0 0.0
        %716 = vmatpush.msra.mxu0 0.0
        %717 = vmatpush.msra.mxu0 0.0
        %718 = vmatpush.msra.mxu0 0.0
        %719 = vmatpush.msra.mxu0 0.0
        %720 = vmatpush.msra.mxu0 0.0
        %721 = vmatpush.msra.mxu0 0.0
        %722 = vmatpush.msra.mxu0 0.0
        %723 = vmatpush.msra.mxu0 0.0
        %724 = vmatpush.msra.mxu0 0.0
        %725 = vmatpush.msra.mxu0 0.0
        %726 = vmatpush.msra.mxu0 0.0
        %727 = vmatpush.msra.mxu0 0.0
        %728 = vmatpush.msra.mxu0 0.0
        %729 = vmatpush.msra.mxu0 %v709
        %730 = vmatmul.f32.gmra.mxu0 %v712
        %v731 = vpop.f32.mrf.mxu0
        %v732 = vadd.f32 0.0, %v731
        %733 = vdwg.mxu0
        %735 = vrot.lane.b32.xlu0 %v732, 24
        %v736 = vpop.permute.xlu0 %735
        %vm738 = vcmask 261312
        %739 = vst.msk [vmem:[#allocation3] sm:$0xff] %vm738, %v736
        %v740 = vld [vmem:[#allocation3] sm:$0xff]
        %v741 = vld [vmem:[#allocation10] sm:$0xff]
        %v742 = vld [vmem:[#allocation10 + $0x8] sm:$0xff]
        %v743 = vld [vmem:[#allocation10 + $0x10] sm:$0xff]
        %v744 = vld [vmem:[#allocation10 + $0x18] sm:$0xff]
        %v745 = vld [vmem:[%s345] sm:$0xff]
        %v747 = vsel %vm432, %v740, 0
        %749 = vmatpush.msra.mxu0 0.0
        %750 = vmatpush.msra.mxu0 0.0
        %751 = vmatpush.msra.mxu0 0.0
        %752 = vmatpush.msra.mxu0 0.0
        %753 = vmatpush.msra.mxu0 0.0
        %754 = vmatpush.msra.mxu0 0.0
        %755 = vmatpush.msra.mxu0 0.0
        %756 = vmatpush.msra.mxu0 0.0
        %757 = vmatpush.msra.mxu0 0.0
        %758 = vmatpush.msra.mxu0 0.0
        %759 = vmatpush.msra.mxu0 0.0
        %760 = vmatpush.msra.mxu0 0.0
        %761 = vmatpush.msra.mxu0 %v744
        %762 = vmatpush.msra.mxu0 %v743
        %763 = vmatpush.msra.mxu0 %v742
        %764 = vmatpush.msra.mxu0 %v741
        %765 = vmatmul.f32.gmra.mxu0 %v747
        %v766 = vpop.f32.mrf.mxu0
        %v767 = vadd.f32 %v745, %v766
        %768 = vdwg.mxu0
        %769 = vst.msk [vmem:[%s377] sm:$0xff] %vm432, %v767
        %v770 = vmul.f32 %v707, 0.25
        %771 = vst.msk [vmem:[%s384] sm:$0xff] %vm460, %v770
        %s772 = sand.u32 %s168, 1
        %s773 = scalar_lea.sflag [#allocation6], %s772
        %s774 = sand.u32 %s168, 1
        %s775 = smul.addr %s774, 8
        %s776 = scalar_lea.vmem [#allocation13], %s775
        %s777 = sand.u32 %s196, 1
        %s778 = scalar_lea.sflag [#allocation15], %s777
        %s779 = sand.u32 %s196, 1
        %s780 = smul.addr %s779, 8
        %s781 = scalar_lea.vmem [#allocation14], %s780
        // Predicated region
        $region65: #{tpu_custom_call.1} parent=39 // pred_check
          %p782 = pneg %p178
        $region66: #{tpu_custom_call.1} parent=39 // pred_check_branch
          %784 = sbr.rel (%p782) target = $region68
        $region67: #{tpu_custom_call.1} parent=39 // pred_region
          %786 = vsyncadd %s773, 0
          %s787 = sadd.s32 %s34, %s33
          %s788 = smul.addr %s787, 8
          %s789 = scalar_lea.hbm %s5, %s788
          %s791 = sshll.u32 %s776, 4
          %s792 = int_to_ptr.vmem [resolvable:$true] %s791
          %s793 = sshll.u32 %s789, 4
          %s794 = int_to_ptr.hbm [resolvable:$true] %s793
          %796 = dma.vmem_to_hbm [thread:$0]  %s792, 128, %s794, %s773
        $region68: #{tpu_custom_call.1} parent=39 // pred_fallthru
          _
        // Predicated region
        $region69: #{tpu_custom_call.1} parent=39 // pred_check
          %p797 = pneg %p206
        $region70: #{tpu_custom_call.1} parent=39 // pred_check_branch
          %799 = sbr.rel (%p797) target = $region72
        $region71: #{tpu_custom_call.1} parent=39 // pred_region
          %801 = vsyncadd %s778, 0
          %s802 = sadd.s32 %s34, %s33
          %s803 = smul.addr %s802, 8
          %s804 = scalar_lea.hbm %s6, %s803
          %s806 = sshll.u32 %s781, 4
          %s807 = int_to_ptr.vmem [resolvable:$true] %s806
          %s808 = sshll.u32 %s804, 4
          %s809 = int_to_ptr.hbm [resolvable:$true] %s808
          %811 = dma.vmem_to_hbm [thread:$0]  %s807, 128, %s809, %s778
        $region72: #{tpu_custom_call.1} parent=39 // pred_fallthru
          _
      $region40: #{tpu_custom_call.1} parent=5 // pred_fallthru
        _
      %p812 = scmp.le.s32.totalorder 2, %s24
      // Predicated region
      $region73: #{tpu_custom_call.1} parent=5 // pred_check
        %p813 = pneg %p812
      $region74: #{tpu_custom_call.1} parent=5 // pred_check_branch
        %815 = sbr.rel (%p813) target = $region76
      $region75: #{tpu_custom_call.1} parent=5 // pred_region
        %s816 = ssub.s32 %s24, 2
        // Predicated region
        $region77: #{tpu_custom_call.1} parent=75 // pred_check
          %p817 = pneg %p184
        $region78: #{tpu_custom_call.1} parent=75 // pred_check_branch
          %819 = sbr.rel (%p817) target = $region80
        $region79: #{tpu_custom_call.1} parent=75 // pred_region
          %s820 = sand.u32 %s169, 1
          %s821 = scalar_lea.sflag [#allocation6], %s820
          %s822 = sand.u32 %s169, 1
          %s823 = smul.addr %s822, 8
          %s824 = scalar_lea.vmem [#allocation13], %s823
          %826 = dma.done %s821, 128
        $region80: #{tpu_custom_call.1} parent=75 // pred_fallthru
          _
        // Predicated region
        $region81: #{tpu_custom_call.1} parent=75 // pred_check
          %p827 = pneg %p212
        $region82: #{tpu_custom_call.1} parent=75 // pred_check_branch
          %829 = sbr.rel (%p827) target = $region84
        $region83: #{tpu_custom_call.1} parent=75 // pred_region
          %s830 = sand.u32 %s197, 1
          %s831 = scalar_lea.sflag [#allocation15], %s830
          %s832 = sand.u32 %s197, 1
          %s833 = smul.addr %s832, 8
          %s834 = scalar_lea.vmem [#allocation14], %s833
          %836 = dma.done %s831, 128
        $region84: #{tpu_custom_call.1} parent=75 // pred_fallthru
          _
      $region76: #{tpu_custom_call.1} parent=5 // pred_fallthru
        _
    $region6: #{tpu_custom_call.1} parent=1 // loop_footer
      %s28 = sadd.s32 1, %s24
    $region7: #{tpu_custom_call.1} parent=1 // loop_footer_branch
      %23 = sbr.rel target = $region3
    $region8: #{tpu_custom_call.1} parent=1 // loop_exit
      _
    %837 = vsyncpa [#allocation5], 1
    %s838 = scalar_lea.sflag [#allocation5], 1
    %839 = vsyncpa %s838, 1
    %840 = vsyncpa [#allocation8], 1
    %841 = vsyncpa [#allocation11], 1
    %842 = vsyncpa [#allocation6], 1
    %s843 = scalar_lea.sflag [#allocation6], 1
    %844 = vsyncpa %s843, 1
    %845 = vsyncpa [#allocation15], 1
    %s846 = scalar_lea.sflag [#allocation15], 1
    %847 = vsyncpa %s846, 1

</llo_original>
